<compile_context>
chip_gen: v7x
topology: tpu7x:2x2x1
jax: 0.10.0
libtpu: 0.0.40
codegen_flags: <defaults>
</compile_context>

<pallas_src>
import jax
import jax.numpy as jnp
from jax.experimental import pallas as pl
from jax.experimental.pallas import tpu as pltpu

EPS = 1e-5  # RevIN eps


def _round_up(x, m):
    return (x + m - 1) // m * m


# ----------------------------------------------------------------------------- kernel
def rlinear_kernel(x_ref, w_ref, b_ref, o_ref):
    # x_ref : [CB, B, L]   f32/bf16  (channel-major block of the input series)
    # w_ref : [CB, L, Pp]  bf16/f32  (RevIN-folded per-channel weights, lane-padded)
    # b_ref : [CB, 1, Pp]  f32       (RevIN-folded per-channel bias, lane-padded)
    # o_ref : [CB, B, Pp]  f32/bf16
    x = x_ref[...].astype(jnp.float32)
    mean = jnp.mean(x, axis=2, keepdims=True)                 # [CB, B, 1]
    var = jnp.mean((x - mean) ** 2, axis=2, keepdims=True)    # unbiased=False, as RevIN
    inv_std = jax.lax.rsqrt(var + EPS)                        # EUP
    stdev = (var + EPS) * inv_std                             # = sqrt(var + EPS), no sqrt/div

    z = (x - mean) * inv_std                                  # pure normalized signal

    # Per-channel linear (RevIN affine + denorm scale already folded into W', b'):
    # batched [B, L] @ [L, Pp] on the MXU, f32 accumulation.
    y = jnp.einsum(
        "cbl,clp->cbp",
        z.astype(w_ref.dtype),
        w_ref[...],
        preferred_element_type=jnp.float32,
    ) + b_ref[...]                                            # [CB, B, Pp]

    # RevIN denormalize (scale/shift only; affine part lives in W', b').
    o_ref[...] = (y * stdev + mean).astype(o_ref.dtype)


# --------------------------------------------------------------------- VMEM budgeting
def _vmem_budget():
    """Generation-aware (vmem_limit_bytes, block_budget_bytes)."""
    try:
        cap = int(pltpu.get_tpu_info().vmem_capacity_bytes)
    except Exception:
        cap = 64 * 1024 * 1024                      # conservative: v7x physical VMEM
    # v7x (64 MiB physical) -> 48 MiB limit; 128 MiB parts (v5e/v6e) -> 96 MiB limit.
    vmem_limit = min((3 * cap) // 4, 96 * 1024 * 1024)
    # Headroom for compiler internal scratch / semaphores / misc.
    block_budget = max(vmem_limit - 8 * 1024 * 1024, 8 * 1024 * 1024)
    return int(vmem_limit), int(block_budget)


def _choose_channel_block(C, B, L, Pp, w_itemsize, block_budget_bytes):
    """Largest channel block whose REAL VMEM footprint fits the budget:
    double-buffered I/O blocks with (sublane, lane) tile padding plus the in-kernel
    full-block temporaries (z f32, z low-precision cast, pre-store y f32)."""
    Bp = _round_up(max(B, 1), 8)                       # f32 sublane padding
    Lx = _round_up(max(L, 1), 128)                     # x slab: L is the lane axis
    w_sublane = max(8, 32 // max(w_itemsize, 1))       # f32->8, bf16->16, int8/fp8->32
    x_tile = Bp * Lx * 4                               # x block (f32 worst case)
    w_tile = _round_up(max(L, 1), w_sublane) * Pp * w_itemsize
    b_tile = 8 * Pp * 4
    o_tile = Bp * Pp * 4
    tmp = (3 * x_tile) // 2 + o_tile                   # z f32 + z cast + pre-store y
    per_chan = 2 * (x_tile + w_tile + b_tile + o_tile) + tmp   # 2x = double buffering
    cb = max(1, block_budget_bytes // per_chan)
    cb = min(cb, max(1, -(-C // 2)))                   # >= 2 grid steps when C permits
    return int(min(cb, C))                             # (v7x two-TensorCore sharding)


# ------------------------------------------------------------------ one-time weight prep
def prepare_rlinear_params(W, b, aw, ab, batch_size, *, weights_dtype=jnp.bfloat16):
    """Hoisted out of the forward hot path; call once and reuse.

    Exactly folds the RevIN affine + denorm scalars into the per-channel linear,
    pads pred_len to a lane-dense multiple of 128, pads channels to the chosen
    channel-block multiple, and casts the weights to `weights_dtype`
    (use jnp.float32 for exact-parity mode)."""
    C, L, P = W.shape
    W = W.astype(jnp.float32)
    b = b.astype(jnp.float32)
    aw = aw.astype(jnp.float32)
    ab = ab.astype(jnp.float32)

    denom = aw + EPS * EPS                                        # [C]
    Wf = W * (aw / denom)[:, None, None]                          # exact fold
    bf = (b + ab[:, None] * jnp.sum(W, axis=1) - ab[:, None]) / denom[:, None]

    Pp = _round_up(P, 128)                                        # lane-dense minor dim
    if Pp != P:
        Wf = jnp.pad(Wf, ((0, 0), (0, 0), (0, Pp - P)))
        bf = jnp.pad(bf, ((0, 0), (0, Pp - P)))

    vmem_limit, block_budget = _vmem_budget()
    w_itemsize = jnp.dtype(weights_dtype).itemsize
    cb = _choose_channel_block(C, batch_size, L, Pp, w_itemsize, block_budget)
    Cp = _round_up(C, cb)
    if Cp != C:
        Wf = jnp.pad(Wf, ((0, Cp - C), (0, 0), (0, 0)))
        bf = jnp.pad(bf, ((0, Cp - C), (0, 0)))

    W_k = Wf.astype(weights_dtype)                                # [Cp, L, Pp]
    b_k = bf.reshape(Cp, 1, Pp).astype(jnp.float32)               # [Cp, 1, Pp]
    meta = dict(C=C, L=L, P=P, Pp=Pp, cb=cb, Cp=Cp, B=batch_size,
                vmem_limit_bytes=vmem_limit)
    return W_k, b_k, meta


# ----------------------------------------------------------------------------- forward
def rlinear_forward_channel_major(x_cbl, W_k, b_k, meta, *, out_dtype=jnp.float32):
    """x_cbl: [C, B, L]; params from prepare_rlinear_params. Returns [C, B, P]."""
    C, L, P, Pp = meta["C"], meta["L"], meta["P"], meta["Pp"]
    cb, Cp = meta["cb"], meta["Cp"]
    Cx, B, Lx = x_cbl.shape
    assert Cx == C and Lx == L, "input shape does not match prepared params"

    if x_cbl.dtype not in (jnp.float32, jnp.bfloat16):
        x_cbl = x_cbl.astype(jnp.float32)       # bf16 x is allowed (halves x HBM read)
    if Cp != C:
        x_cbl = jnp.pad(x_cbl, ((0, Cp - C), (0, 0), (0, 0)))

    out = pl.pallas_call(
        rlinear_kernel,
        out_shape=jax.ShapeDtypeStruct((Cp, B, Pp), out_dtype),
        grid_spec=pltpu.PrefetchScalarGridSpec(
            num_scalar_prefetch=0,
            grid=(Cp // cb,),
            in_specs=[
                pl.BlockSpec((cb, B, L), lambda c: (c, 0, 0)),
                pl.BlockSpec((cb, L, Pp), lambda c: (c, 0, 0)),
                pl.BlockSpec((cb, 1, Pp), lambda c: (c, 0, 0)),
            ],
            out_specs=pl.BlockSpec((cb, B, Pp), lambda c: (c, 0, 0)),
        ),
        compiler_params=pltpu.CompilerParams(
            dimension_semantics=("parallel",),          # independent channel blocks
            vmem_limit_bytes=meta["vmem_limit_bytes"],
        ),
    )(x_cbl, W_k, b_k)

    return out[:C, :, :P]                               # strip channel / pred_len padding


def rlinear_forward(x, W_k, b_k, meta, **kwargs):
    """PyTorch-layout wrapper: x [B, L, C] -> [B, P, C].

    NOTE: the two transposes are extra HBM passes; performance-sensitive callers
    should feed channel-major data to rlinear_forward_channel_major and consume
    its [C, B, P] output directly. The crop + transpose below fuse into one XLA copy.
    """
    x_cbl = jnp.transpose(x, (2, 0, 1))                           # [C, B, L]
    out_cbp = rlinear_forward_channel_major(x_cbl, W_k, b_k, meta, **kwargs)
    return jnp.transpose(out_cbp, (1, 2, 0))                      # [B, P, C]


# ----------------------------------------------------------------------------- reference
def reference(x, W, b, aw, ab):
    """Pure-JAX f32 reference of the same (unfolded) forward pass."""
    mean = jnp.mean(x, axis=1, keepdims=True)                     # [B, 1, C]
    var = jnp.mean((x - mean) ** 2, axis=1, keepdims=True)
    stdev = jnp.sqrt(var + EPS)
    xn = (x - mean) / stdev * aw + ab
    y = jnp.einsum("blc,clp->bpc", xn, W) + b.T[None]             # [B, P, C]
    y = (y - ab) / (aw + EPS * EPS)
    y = y * stdev + mean
    return y


if __name__ == "__main__":
    B, L, P, C = 2, 8, 8, 4   # batch, seq_len, pred_len, enc_in (channels)

    key = jax.random.PRNGKey(0)
    k_x, k_w, k_b, k_aw, k_ab = jax.random.split(key, 5)

    x_enc = jax.random.normal(k_x, (B, L, C), dtype=jnp.float32)
    # Per-channel linear params (ParallelLinear with individual=True).
    W = jax.random.normal(k_w, (C, L, P), dtype=jnp.float32) * 0.1
    b = jax.random.normal(k_b, (C, P), dtype=jnp.float32) * 0.1
    # RevIN affine params (nominally ones/zeros; perturbed so the affine path is exercised).
    aw = 1.0 + 0.1 * jax.random.normal(k_aw, (C,), dtype=jnp.float32)
    ab = 0.1 * jax.random.normal(k_ab, (C,), dtype=jnp.float32)

    # One-time weight preparation (hoisted out of the forward hot path).
    W_k, b_k, meta = prepare_rlinear_params(W, b, aw, ab, batch_size=B)
    W_k, b_k = jax.block_until_ready((W_k, b_k))

    out = rlinear_forward(x_enc, W_k, b_k, meta)
    out = jax.block_until_ready(out)

    ref = reference(x_enc, W, b, aw, ab)
    assert out.shape == (B, P, C)
    # Tolerance relaxed for bf16 weights/activations (f32 accumulation); the RevIN
    # affine/denorm fold itself is exact.
    assert jnp.allclose(out, ref, rtol=5e-2, atol=3e-2), "mismatch vs JAX reference"

    print("KERNEL_OK")
</pallas_src>

<mosaic_0001>
module attributes {stable_mosaic.version = 11 : i64} {
  func.func @rlinear_kernel(%arg0: i32, %arg1: memref<2x2x8xf32, #tpu.memory_space<vmem>>, %arg2: memref<2x8x128xbf16, #tpu.memory_space<vmem>>, %arg3: memref<2x1x128xf32, #tpu.memory_space<vmem>>, %arg4: memref<2x2x128xf32, #tpu.memory_space<vmem>>) attributes {dimension_semantics = [#tpu.dimension_semantics<parallel>], iteration_bounds = array<i64: 2>, scalar_prefetch = 0 : i64, scratch_operands = 0 : i64, tpu.core_type = #tpu.core_type<tc>, window_params = [{transform_indices = @transform_0, window_bounds = array<i64: 2, 2, 8>}, {transform_indices = @transform_1, window_bounds = array<i64: 2, 8, 128>}, {transform_indices = @transform_2, window_bounds = array<i64: 2, 1, 128>}, {transform_indices = @transform_3, window_bounds = array<i64: 2, 2, 128>}]} {
    %c0 = arith.constant 0 : index
    %c0_0 = arith.constant 0 : index
    %c0_1 = arith.constant 0 : index
    %0 = vector.load %arg1[%c0, %c0_0, %c0_1] : memref<2x2x8xf32, #tpu.memory_space<vmem>>, vector<2x2x8xf32>
    %cst = arith.constant dense<0.000000e+00> : vector<2x2xf32>
    %1 = vector.multi_reduction <add>, %0, %cst [2] : vector<2x2x8xf32> to vector<2x2xf32>
    %2 = vector.shape_cast %1 : vector<2x2xf32> to vector<2x2x1xf32>
    %cst_2 = arith.constant 8.000000e+00 : f32
    %3 = vector.broadcast %cst_2 : f32 to vector<2x2x1xf32>
    %4 = arith.divf %2, %3 : vector<2x2x1xf32>
    %5 = vector.broadcast %4 : vector<2x2x1xf32> to vector<2x2x8xf32>
    %6 = arith.subf %0, %5 : vector<2x2x8xf32>
    %7 = arith.mulf %6, %6 : vector<2x2x8xf32>
    %cst_3 = arith.constant dense<0.000000e+00> : vector<2x2xf32>
    %8 = vector.multi_reduction <add>, %7, %cst_3 [2] : vector<2x2x8xf32> to vector<2x2xf32>
    %9 = vector.shape_cast %8 : vector<2x2xf32> to vector<2x2x1xf32>
    %cst_4 = arith.constant 8.000000e+00 : f32
    %10 = vector.broadcast %cst_4 : f32 to vector<2x2x1xf32>
    %11 = arith.divf %9, %10 : vector<2x2x1xf32>
    %cst_5 = arith.constant 9.99999974E-6 : f32
    %12 = vector.broadcast %cst_5 : f32 to vector<2x2x1xf32>
    %13 = arith.addf %11, %12 : vector<2x2x1xf32>
    %14 = math.rsqrt %13 : vector<2x2x1xf32>
    %cst_6 = arith.constant 9.99999974E-6 : f32
    %15 = vector.broadcast %cst_6 : f32 to vector<2x2x1xf32>
    %16 = arith.addf %11, %15 : vector<2x2x1xf32>
    %17 = arith.mulf %16, %14 : vector<2x2x1xf32>
    %18 = vector.broadcast %4 : vector<2x2x1xf32> to vector<2x2x8xf32>
    %19 = arith.subf %0, %18 : vector<2x2x8xf32>
    %20 = vector.broadcast %14 : vector<2x2x1xf32> to vector<2x2x8xf32>
    %21 = arith.mulf %19, %20 : vector<2x2x8xf32>
    %22 = arith.truncf %21 : vector<2x2x8xf32> to vector<2x2x8xbf16>
    %c0_7 = arith.constant 0 : index
    %c0_8 = arith.constant 0 : index
    %c0_9 = arith.constant 0 : index
    %23 = vector.load %arg2[%c0_7, %c0_8, %c0_9] : memref<2x8x128xbf16, #tpu.memory_space<vmem>>, vector<2x8x128xbf16>
    "tpu.trace_start"() <{level = 10 : i32, message = "cbl,clp->cbp"}> : () -> ()
    %cst_10 = arith.constant dense<0.000000e+00> : vector<2x2x128xf32>
    %24 = tpu.matmul %22, %23, %cst_10 {dimension_numbers = #tpu.dot_dimension_numbers<[2], [1], [1], [2], [0, 0, 0, 1, 1, 2], [0], [0]>} : vector<2x2x8xbf16>, vector<2x8x128xbf16>, vector<2x2x128xf32> -> vector<2x2x128xf32>
    "tpu.trace_stop"() : () -> ()
    %c0_11 = arith.constant 0 : index
    %c0_12 = arith.constant 0 : index
    %c0_13 = arith.constant 0 : index
    %25 = vector.load %arg3[%c0_11, %c0_12, %c0_13] : memref<2x1x128xf32, #tpu.memory_space<vmem>>, vector<2x1x128xf32>
    %26 = vector.broadcast %25 : vector<2x1x128xf32> to vector<2x2x128xf32>
    %27 = arith.addf %24, %26 : vector<2x2x128xf32>
    %28 = vector.broadcast %17 : vector<2x2x1xf32> to vector<2x2x128xf32>
    %29 = arith.mulf %27, %28 : vector<2x2x128xf32>
    %30 = vector.broadcast %4 : vector<2x2x1xf32> to vector<2x2x128xf32>
    %31 = arith.addf %29, %30 : vector<2x2x128xf32>
    %c0_14 = arith.constant 0 : index
    %c0_15 = arith.constant 0 : index
    %c0_16 = arith.constant 0 : index
    %32 = vector.load %arg4[%c0_14, %c0_15, %c0_16] : memref<2x2x128xf32, #tpu.memory_space<vmem>>, vector<2x2x128xf32>
    tpu.vector_store %arg4[%c0_14, %c0_15, %c0_16], %31 {strides = array<i32>} : memref<2x2x128xf32, #tpu.memory_space<vmem>>, vector<2x2x128xf32>,
    return
  }
  func.func @transform_0(%arg0: i32) -> (i32, i32, i32) {
    %c0_i32 = arith.constant 0 : i32
    %c0_i32_0 = arith.constant 0 : i32
    %c0_i32_1 = arith.constant 0 : i32
    return %arg0, %c0_i32, %c0_i32_0 : i32, i32, i32
  }
  func.func @transform_1(%arg0: i32) -> (i32, i32, i32) {
    %c0_i32 = arith.constant 0 : i32
    %c0_i32_0 = arith.constant 0 : i32
    %c0_i32_1 = arith.constant 0 : i32
    return %arg0, %c0_i32, %c0_i32_0 : i32, i32, i32
  }
  func.func @transform_2(%arg0: i32) -> (i32, i32, i32) {
    %c0_i32 = arith.constant 0 : i32
    %c0_i32_0 = arith.constant 0 : i32
    %c0_i32_1 = arith.constant 0 : i32
    return %arg0, %c0_i32, %c0_i32_0 : i32, i32, i32
  }
  func.func @transform_3(%arg0: i32) -> (i32, i32, i32) {
    %c0_i32 = arith.constant 0 : i32
    %c0_i32_0 = arith.constant 0 : i32
    %c0_i32_1 = arith.constant 0 : i32
    return %arg0, %c0_i32, %c0_i32_0 : i32, i32, i32
  }
}

</mosaic_0001>

<llo_original>
// kernel: tpu_custom_call.1
$region0: #{tpu_custom_call.1}
  #allocation0 [shape = 'u32[]', space=smem, size = 0x4, offset = 0x4, fixed_abs, tag = 'smem constant byte address 0x4 - core index']
  #allocation1 [shape = 'u32[144,128]{1,0:T(1,128)}', space=vmem, size = 0x12000, scoped, tag = 'internal scratch']
  %s0 = inlined_call_operand.hbm [shape: f32[4,2,8], index: 0, kind: input, shape index: {}]
  %s1 = inlined_call_operand.hbm [shape: bf16[4,8,128], index: 1, kind: input, shape index: {}]
  %s2 = inlined_call_operand.vmem [shape: f32[4,1,128], index: 2, kind: input, shape index: {}]
  %s3 = inlined_call_operand.hbm [shape: f32[4,2,128], index: 3, kind: output, shape index: {}]
  %s4 = sld [smem:[#allocation0]]
  $region53: #{tpu_custom_call.1} parent=0
    _
  %s6 = ssub.s32 1, %s4
  %s7 = scalar_select 0, %s6, %s4
  $region1: #{tpu_custom_call.1} parent=0
    #allocation2 [shape = 'u8[4096]{0}', space=vmem, size = 0x1000, scoped, tag = 'input window, operand 0']
    #allocation3 [shape = 's32[2]{0}', space=sflag, size = 0x8, scoped, tag = 'scoped memory for tpu_custom_call.1']
    #allocation4 [shape = 's32[2]{0}', space=sflag, size = 0x8, scoped, tag = 'scoped memory for tpu_custom_call.1']
    #allocation5 [shape = 'u8[8192]{0}', space=vmem, size = 0x2000, scoped, tag = 'input window, operand 1']
    #allocation6 [shape = 's32[2]{0}', space=sflag, size = 0x8, scoped, tag = 'scoped memory for tpu_custom_call.1']
    #allocation7 [shape = 'u8[4096]{0}', space=vmem, size = 0x1000, scoped, tag = 'output window, operand 0']
    %8 = vsyncpa [#allocation3], 0
    %s9 = scalar_lea.sflag [#allocation3], 1
    %10 = vsyncpa %s9, 0
    %11 = vsyncpa [#allocation6], 0
    %s12 = scalar_lea.sflag [#allocation6], 1
    %13 = vsyncpa %s12, 0
    %14 = vsyncpa [#allocation4], 0
    %s15 = scalar_lea.sflag [#allocation4], 1
    %16 = vsyncpa %s15, 0
    loop: start=0, step=1, limit=4
    $region2: #{tpu_custom_call.1} parent=1 // loop_pre_header
      _
    $region3: #{tpu_custom_call.1} parent=1 // loop_header
      %s18 = sphi 0, %s22
      %p19 = scmp.ge.s32.totalorder %s18, 4
      %s28 = sphi 0, %s30
      %s31 = sphi 0, %s28
      %s32 = sphi 0, %s31
      %s48 = sphi 0, %s32
      %s54 = sphi 0, %s56
      %s57 = sphi 0, %s54
      %s58 = sphi 0, %s57
      %s74 = sphi 0, %s58
      %s80 = sphi 0, %s82
      %s83 = sphi 0, %s80
      %s84 = sphi 0, %s83
      %s100 = sphi 0, %s84
      %s106 = sphi 0, %s108
      %s109 = sphi 0, %s106
      %s110 = sphi 0, %s109
      %s126 = sphi 0, %s110
    $region4: #{tpu_custom_call.1} parent=1 // loop_header_branch
      %21 = sbr.rel (%p19) target = $region8
    $region5: #{tpu_custom_call.1} parent=1 // loop_body
      %s23 = ssub.s32 %s18, 1
      %s24 = ssub.s32 %s18, 2
      %s25 = sadd.s32 %s18, 1
      %s26 = ssub.s32 %s18, %s25
      %p27 = scmp.eq.s32.totalorder %s26, 0
      %s29 = sadd.s32 %s28, 1
      %s30 = scalar_select %p27, %s28, %s29
      %p33 = pneg %p27
      %p34 = scmp.eq.s32.totalorder %s18, 1
      %p35 = por %p33, %p34
      %p36 = scmp.ne.s32.totalorder %s28, %s31
      %p37 = scmp.eq.s32.totalorder %s18, 0
      %p38 = por %p36, %p37
      %p39 = scmp.ne.s32.totalorder %s28, %s31
      %p40 = scmp.eq.s32.totalorder %s23, 1
      %p41 = por %p39, %p40
      %p42 = scmp.ne.s32.totalorder %s31, %s32
      %p43 = scmp.eq.s32.totalorder %s23, 0
      %p44 = por %p42, %p43
      %p45 = scmp.ne.s32.totalorder %s31, %s32
      %p46 = scmp.eq.s32.totalorder %s24, 1
      %p47 = por %p45, %p46
      %p49 = scmp.ne.s32.totalorder %s32, %s48
      %p50 = scmp.eq.s32.totalorder %s24, 0
      %p51 = por %p49, %p50
      %s52 = ssub.s32 %s18, %s25
      %p53 = scmp.eq.s32.totalorder %s52, 0
      %s55 = sadd.s32 %s54, 1
      %s56 = scalar_select %p53, %s54, %s55
      %p59 = pneg %p53
      %p60 = scmp.eq.s32.totalorder %s18, 1
      %p61 = por %p59, %p60
      %p62 = scmp.ne.s32.totalorder %s54, %s57
      %p63 = scmp.eq.s32.totalorder %s18, 0
      %p64 = por %p62, %p63
      %p65 = scmp.ne.s32.totalorder %s54, %s57
      %p66 = scmp.eq.s32.totalorder %s23, 1
      %p67 = por %p65, %p66
      %p68 = scmp.ne.s32.totalorder %s57, %s58
      %p69 = scmp.eq.s32.totalorder %s23, 0
      %p70 = por %p68, %p69
      %p71 = scmp.ne.s32.totalorder %s57, %s58
      %p72 = scmp.eq.s32.totalorder %s24, 1
      %p73 = por %p71, %p72
      %p75 = scmp.ne.s32.totalorder %s58, %s74
      %p76 = scmp.eq.s32.totalorder %s24, 0
      %p77 = por %p75, %p76
      %s78 = ssub.s32 %s18, %s25
      %p79 = scmp.eq.s32.totalorder %s78, 0
      %s81 = sadd.s32 %s80, 1
      %s82 = scalar_select %p79, %s80, %s81
      %p85 = pneg %p79
      %p86 = scmp.eq.s32.totalorder %s18, 1
      %p87 = por %p85, %p86
      %p88 = scmp.ne.s32.totalorder %s80, %s83
      %p89 = scmp.eq.s32.totalorder %s18, 0
      %p90 = por %p88, %p89
      %p91 = scmp.ne.s32.totalorder %s80, %s83
      %p92 = scmp.eq.s32.totalorder %s23, 1
      %p93 = por %p91, %p92
      %p94 = scmp.ne.s32.totalorder %s83, %s84
      %p95 = scmp.eq.s32.totalorder %s23, 0
      %p96 = por %p94, %p95
      %p97 = scmp.ne.s32.totalorder %s83, %s84
      %p98 = scmp.eq.s32.totalorder %s24, 1
      %p99 = por %p97, %p98
      %p101 = scmp.ne.s32.totalorder %s84, %s100
      %p102 = scmp.eq.s32.totalorder %s24, 0
      %p103 = por %p101, %p102
      %s104 = ssub.s32 %s18, %s25
      %p105 = scmp.eq.s32.totalorder %s104, 0
      %s107 = sadd.s32 %s106, 1
      %s108 = scalar_select %p105, %s106, %s107
      %p111 = pneg %p105
      %p112 = scmp.eq.s32.totalorder %s18, 1
      %p113 = por %p111, %p112
      %p114 = scmp.ne.s32.totalorder %s106, %s109
      %p115 = scmp.eq.s32.totalorder %s18, 0
      %p116 = por %p114, %p115
      %p117 = scmp.ne.s32.totalorder %s106, %s109
      %p118 = scmp.eq.s32.totalorder %s23, 1
      %p119 = por %p117, %p118
      %p120 = scmp.ne.s32.totalorder %s109, %s110
      %p121 = scmp.eq.s32.totalorder %s23, 0
      %p122 = por %p120, %p121
      %p123 = scmp.ne.s32.totalorder %s109, %s110
      %p124 = scmp.eq.s32.totalorder %s24, 1
      %p125 = por %p123, %p124
      %p127 = scmp.ne.s32.totalorder %s110, %s126
      %p128 = scmp.eq.s32.totalorder %s24, 0
      %p129 = por %p127, %p128
      %p130 = scmp.le.s32.totalorder 1, %s18
      %p131 = scmp.lt.s32.totalorder %s18, 3
      %p132 = pnand %p130, %p131
      %p133 = pneg %p132
      // Predicated region
      $region9: #{tpu_custom_call.1} parent=5 // pred_check
        _
      $region10: #{tpu_custom_call.1} parent=5 // pred_check_branch
        %135 = sbr.rel (%p132) target = $region12
      $region11: #{tpu_custom_call.1} parent=5 // pred_region
        %s136 = ssub.s32 %s18, 1
      $region12: #{tpu_custom_call.1} parent=5 // pred_fallthru
        _
      %p137 = scmp.lt.s32.totalorder %s18, 2
      // Predicated region
      $region13: #{tpu_custom_call.1} parent=5 // pred_check
        %p138 = pneg %p137
      $region14: #{tpu_custom_call.1} parent=5 // pred_check_branch
        %140 = sbr.rel (%p138) target = $region16
      $region15: #{tpu_custom_call.1} parent=5 // pred_region
        // Predicated region
        $region17: #{tpu_custom_call.1} parent=15 // pred_check
          %p141 = pneg %p38
        $region18: #{tpu_custom_call.1} parent=15 // pred_check_branch
          %143 = sbr.rel (%p141) target = $region20
        $region19: #{tpu_custom_call.1} parent=15 // pred_region
          %s144 = sand.u32 %s28, 1
          %s145 = scalar_lea.sflag [#allocation3], %s144
          %s146 = sand.u32 %s28, 1
          %s147 = smul.addr %s146, 4
          %s148 = scalar_lea.vmem [#allocation2], %s147
          %s149 = smul.u32 2, %s18
          %s151 = ssub.s32 64, 64
          %152 = vsyncadd %s145, %s151
          %s153 = smul.addr %s149, 32
          %s154 = scalar_lea.hbm %s0, %s153
          %s155 = sshll.u32 %s148, 4
          %s156 = int_to_ptr.vmem [resolvable:$true] %s155
          %161 = dma.hbm_to_vmem [thread:$0]  %s154, 64, %s156, %s145, 32, 32, 2
        $region20: #{tpu_custom_call.1} parent=15 // pred_fallthru
          _
        // Predicated region
        $region21: #{tpu_custom_call.1} parent=15 // pred_check
          %p162 = pneg %p64
        $region22: #{tpu_custom_call.1} parent=15 // pred_check_branch
          %164 = sbr.rel (%p162) target = $region24
        $region23: #{tpu_custom_call.1} parent=15 // pred_region
          %s165 = sand.u32 %s54, 1
          %s166 = scalar_lea.sflag [#allocation6], %s165
          %s167 = sand.u32 %s54, 1
          %s168 = smul.addr %s167, 8
          %s169 = scalar_lea.vmem [#allocation5], %s168
          %s170 = smul.u32 2, %s18
          %s172 = ssub.s32 128, 128
          %173 = vsyncadd %s166, %s172
          %s174 = smul.addr %s170, 64
          %s175 = scalar_lea.hbm %s1, %s174
          %s176 = sshll.u32 %s169, 4
          %s177 = int_to_ptr.vmem [resolvable:$true] %s176
          %182 = dma.hbm_to_vmem [thread:$0]  %s175, 128, %s177, %s166, 64, 64, 4
        $region24: #{tpu_custom_call.1} parent=15 // pred_fallthru
          _
        // Predicated region
        $region25: #{tpu_custom_call.1} parent=15 // pred_check
          %p183 = pneg %p90
        $region26: #{tpu_custom_call.1} parent=15 // pred_check_branch
          %185 = sbr.rel (%p183) target = $region28
        $region27: #{tpu_custom_call.1} parent=15 // pred_region
          %s186 = smul.u32 2, %s18
          %p187 = scmp.lt.s32.totalorder %s186, 3
          %s188 = scalar_select %p187, %s186, 3
          %s189 = scalar_lea.vmem %s2, %s188
          %s190 = smul.u32 2, %s18
        $region28: #{tpu_custom_call.1} parent=15 // pred_fallthru
          _
      $region16: #{tpu_custom_call.1} parent=5 // pred_fallthru
        _
      %p191 = scmp.le.s32.totalorder 1, %s18
      %p192 = scmp.lt.s32.totalorder %s18, 3
      %p193 = pnand %p191, %p192
      %p194 = pneg %p193
      // Predicated region
      $region29: #{tpu_custom_call.1} parent=5 // pred_check
        _
      $region30: #{tpu_custom_call.1} parent=5 // pred_check_branch
        %196 = sbr.rel (%p193) target = $region32
      $region31: #{tpu_custom_call.1} parent=5 // pred_region
        %s197 = ssub.s32 %s18, 1
        %s198 = sand.u32 %s31, 1
        %s199 = scalar_lea.sflag [#allocation3], %s198
        %s200 = sand.u32 %s31, 1
        %s201 = smul.addr %s200, 4
        %s202 = scalar_lea.vmem [#allocation2], %s201
        // Predicated region
        $region33: #{tpu_custom_call.1} parent=31 // pred_check
          %p203 = pneg %p44
        $region34: #{tpu_custom_call.1} parent=31 // pred_check_branch
          %205 = sbr.rel (%p203) target = $region36
        $region35: #{tpu_custom_call.1} parent=31 // pred_region
          %206 = dma.done %s199, 64
        $region36: #{tpu_custom_call.1} parent=31 // pred_fallthru
          _
        %s207 = sand.u32 %s57, 1
        %s208 = scalar_lea.sflag [#allocation6], %s207
        %s209 = sand.u32 %s57, 1
        %s210 = smul.addr %s209, 8
        %s211 = scalar_lea.vmem [#allocation5], %s210
        // Predicated region
        $region37: #{tpu_custom_call.1} parent=31 // pred_check
          %p212 = pneg %p70
        $region38: #{tpu_custom_call.1} parent=31 // pred_check_branch
          %214 = sbr.rel (%p212) target = $region40
        $region39: #{tpu_custom_call.1} parent=31 // pred_region
          %215 = dma.done %s208, 128
        $region40: #{tpu_custom_call.1} parent=31 // pred_fallthru
          _
        %s216 = sand.u32 %s31, 1
        %s217 = scalar_lea.sflag [#allocation3], %s216
        %s218 = sand.u32 %s31, 1
        %s219 = smul.addr %s218, 4
        %s220 = scalar_lea.vmem [#allocation2], %s219
        %p221 = pneg %p44
        %p222 = pneg %p41
        %s223 = sand.u32 %s57, 1
        %s224 = scalar_lea.sflag [#allocation6], %s223
        %s225 = sand.u32 %s57, 1
        %s226 = smul.addr %s225, 8
        %s227 = scalar_lea.vmem [#allocation5], %s226
        %p228 = pneg %p70
        %p229 = pneg %p67
        %s230 = smul.u32 2, %s23
        %p231 = scmp.lt.s32.totalorder %s230, 3
        %s232 = scalar_select %p231, %s230, 3
        %s233 = scalar_lea.vmem %s2, %s232
        %p234 = pneg %p96
        %p235 = pneg %p93
        %p236 = pneg %p122
        %p237 = pneg %p119
        %s238 = sand.u32 %s109, 1
        %s239 = scalar_lea.sflag [#allocation4], %s238
        %s240 = sand.u32 %s109, 1
        %s241 = smul.addr %s240, 4
        %s242 = scalar_lea.vmem [#allocation7], %s241
        %s243 = smul.u32 2, %s23
        %s244 = smul.u32 2, %s23
        %s245 = smul.u32 2, %s23
        %p246 = scmp.lt.s32.totalorder %s245, 3
        %s247 = scalar_select %p246, %s245, 3
        %s248 = scalar_lea.vmem %s2, %s247
        %s249 = smul.u32 2, %s23
        %s250 = smul.u32 2, %s23
        %v252 = vld [vmem:[%s202] sm:$0x3]
        %v253 = vld [vmem:[%s202 + $0x2] sm:$0x3]
        %vm254 = vcmask 58368
        %v255 = vsel %vm254, %v252, 0.0
        %256 = vadd.xlane.f32.xlu0 %v255
        %v257 = vpop.xlane.xlu0 %256
        %v258 = vsel %vm254, %v253, 0.0
        %259 = vadd.xlane.f32.xlu0 %v258
        %v260 = vpop.xlane.xlu0 %259
        %v261 = vrcp.pop 8.0
        %v262 = vmul.f32 %v257, %v261
        %v263 = vmul.f32 %v260, %v261
        %v264 = vsub.f32 %v252, %v262
        %v265 = vsub.f32 %v253, %v263
        %v266 = vmul.f32 %v264, %v264
        %v267 = vmul.f32 %v265, %v265
        %v268 = vsel %vm254, %v266, 0.0
        %269 = vadd.xlane.f32.xlu0 %v268
        %v270 = vpop.xlane.xlu0 %269
        %v271 = vsel %vm254, %v267, 0.0
        %272 = vadd.xlane.f32.xlu0 %v271
        %v273 = vpop.xlane.xlu0 %272
        %v274 = vmul.f32 %v270, %v261
        %v275 = vmul.f32 %v273, %v261
        %v276 = vadd.f32 %v274, 1e-05
        %v277 = vadd.f32 %v275, 1e-05
        %v278 = vrsqrt.pop %v276
        %v279 = vrsqrt.pop %v277
        %v280 = vmul.f32 %v276, %v278
        %v281 = vmul.f32 %v277, %v279
        %v282 = vmul.f32 %v264, %v278
        %v283 = vmul.f32 %v265, %v279
        %v284 = vpack.c.bf16 %v282, %v282
        %v285 = vpack.c.bf16 %v283, %v283
        %v286 = vld [vmem:[%s211] sm:$0xf]
        %v287 = vld [vmem:[%s211 + $0x4] sm:$0xf]
        %v288 = vld [vmem:[%s248] sm:$0x1]
        %v289 = vld [vmem:[%s248 + $0x1] sm:$0x1]
        %v292 = vlaneseq
        %v293 = vshrl.u32 %v292, 7
        %v294 = vsub.s32 0, %v293
        %v295 = vrot.slane %v288, %v294
        %v296 = vlaneseq
        %v297 = vshrl.u32 %v296, 7
        %v298 = vsub.s32 0, %v297
        %v299 = vrot.slane %v289, %v298
        %vm302 = vcmask 64512
        %v304 = vsel %vm302, %v284, 0
        %vm306 = vcmask 1043456
        %v308 = vsel %vm306, %v286, 0
        %310 = vmatprep.subr.bf16.mxu0 0
        %311 = vmatpush1.bf16.msra.mxu0 %v308
        %312 = vmatprep.subr.bf16.mxu0 0
        %313 = vmatpush1.bf16.msra.mxu0 0
        %314 = vmatprep.subr.bf16.mxu0 0
        %315 = vmatpush1.bf16.msra.mxu0 0
        %316 = vmatprep.subr.bf16.mxu0 0
        %317 = vmatpush1.bf16.msra.mxu0 0
        %318 = vmatprep.subr.bf16.mxu0 0
        %319 = vmatpush1.bf16.msra.mxu0 0
        %320 = vmatprep.subr.bf16.mxu0 0
        %321 = vmatpush1.bf16.msra.mxu0 0
        %322 = vmatprep.subr.bf16.mxu0 0
        %323 = vmatpush1.bf16.msra.mxu0 0
        %324 = vmatprep.subr.bf16.mxu0 0
        %325 = vmatpush1.bf16.msra.mxu0 0
        %326 = vmatprep.subr.bf16.mxu0 0
        %327 = vmatpush1.bf16.msra.mxu0 0
        %328 = vmatprep.subr.bf16.mxu0 0
        %329 = vmatpush1.bf16.msra.mxu0 0
        %330 = vmatprep.subr.bf16.mxu0 0
        %331 = vmatpush1.bf16.msra.mxu0 0
        %332 = vmatprep.subr.bf16.mxu0 0
        %333 = vmatpush1.bf16.msra.mxu0 0
        %334 = vmatprep.subr.bf16.mxu0 0
        %335 = vmatpush1.bf16.msra.mxu0 0
        %336 = vmatprep.subr.bf16.mxu0 0
        %337 = vmatpush1.bf16.msra.mxu0 0
        %338 = vmatprep.subr.bf16.mxu0 0
        %339 = vmatpush1.bf16.msra.mxu0 0
        %340 = vmatprep.subr.bf16.mxu0 0
        %341 = vmatpush1.bf16.msra.mxu0 0
        %342 = vmatprep.mubr.bf16.mxu0 0
        %343 = vmatmul.mubr.bf16.gmra.mrb[0].mxu0 %v304
        %v344 = vpop.f32.mrb[0].mxu0
        %v345 = vadd.f32 %v295, %v344
        %v346 = vpop.f32.mrb[0].mxu0
        %v347 = vpop.f32.mrb[0].mxu0
        %v348 = vpop.f32.mrb[0].mxu0
        %349 = vdwg.mxu0
        %v351 = vsel %vm302, %v285, 0
        %v354 = vsel %vm306, %v287, 0
        %356 = vmatprep.subr.bf16.mxu0 0
        %357 = vmatpush1.bf16.msra.mxu0 %v354
        %358 = vmatprep.subr.bf16.mxu0 0
        %359 = vmatpush1.bf16.msra.mxu0 0
        %360 = vmatprep.subr.bf16.mxu0 0
        %361 = vmatpush1.bf16.msra.mxu0 0
        %362 = vmatprep.subr.bf16.mxu0 0
        %363 = vmatpush1.bf16.msra.mxu0 0
        %364 = vmatprep.subr.bf16.mxu0 0
        %365 = vmatpush1.bf16.msra.mxu0 0
        %366 = vmatprep.subr.bf16.mxu0 0
        %367 = vmatpush1.bf16.msra.mxu0 0
        %368 = vmatprep.subr.bf16.mxu0 0
        %369 = vmatpush1.bf16.msra.mxu0 0
        %370 = vmatprep.subr.bf16.mxu0 0
        %371 = vmatpush1.bf16.msra.mxu0 0
        %372 = vmatprep.subr.bf16.mxu0 0
        %373 = vmatpush1.bf16.msra.mxu0 0
        %374 = vmatprep.subr.bf16.mxu0 0
        %375 = vmatpush1.bf16.msra.mxu0 0
        %376 = vmatprep.subr.bf16.mxu0 0
        %377 = vmatpush1.bf16.msra.mxu0 0
        %378 = vmatprep.subr.bf16.mxu0 0
        %379 = vmatpush1.bf16.msra.mxu0 0
        %380 = vmatprep.subr.bf16.mxu0 0
        %381 = vmatpush1.bf16.msra.mxu0 0
        %382 = vmatprep.subr.bf16.mxu0 0
        %383 = vmatpush1.bf16.msra.mxu0 0
        %384 = vmatprep.subr.bf16.mxu0 0
        %385 = vmatpush1.bf16.msra.mxu0 0
        %386 = vmatprep.subr.bf16.mxu0 0
        %387 = vmatpush1.bf16.msra.mxu0 0
        %388 = vmatprep.mubr.bf16.mxu0 0
        %389 = vmatmul.mubr.bf16.gmra.mrb[0].mxu0 %v351
        %v390 = vpop.f32.mrb[0].mxu0
        %v391 = vadd.f32 %v299, %v390
        %v392 = vpop.f32.mrb[0].mxu0
        %v393 = vpop.f32.mrb[0].mxu0
        %v394 = vpop.f32.mrb[0].mxu0
        %395 = vdwg.mxu0
        %v396 = vmul.f32 %v345, %v280
        %v397 = vmul.f32 %v391, %v281
        %v398 = vadd.f32 %v396, %v262
        %v399 = vadd.f32 %v397, %v263
        %400 = vst [vmem:[%s242] sm:$0x3] %v398
        %401 = vst [vmem:[%s242 + $0x2] sm:$0x3] %v399
        %s402 = sand.u32 %s109, 1
        %s403 = scalar_lea.sflag [#allocation4], %s402
        %s404 = sand.u32 %s109, 1
        %s405 = smul.addr %s404, 4
        %s406 = scalar_lea.vmem [#allocation7], %s405
        // Predicated region
        $region41: #{tpu_custom_call.1} parent=31 // pred_check
          %p407 = pneg %p119
        $region42: #{tpu_custom_call.1} parent=31 // pred_check_branch
          %409 = sbr.rel (%p407) target = $region44
        $region43: #{tpu_custom_call.1} parent=31 // pred_region
          %s410 = smul.u32 2, %s23
          %s412 = ssub.s32 64, 64
          %413 = vsyncadd %s403, %s412
          %s414 = smul.addr %s410, 32
          %s415 = scalar_lea.hbm %s3, %s414
          %s416 = sshll.u32 %s406, 4
          %s417 = int_to_ptr.vmem [resolvable:$true] %s416
          %422 = dma.vmem_to_hbm [thread:$0]  %s417, 64, %s415, %s403, 32, 32, 2
        $region44: #{tpu_custom_call.1} parent=31 // pred_fallthru
          _
      $region32: #{tpu_custom_call.1} parent=5 // pred_fallthru
        _
      %p423 = scmp.le.s32.totalorder 2, %s18
      // Predicated region
      $region45: #{tpu_custom_call.1} parent=5 // pred_check
        %p424 = pneg %p423
      $region46: #{tpu_custom_call.1} parent=5 // pred_check_branch
        %426 = sbr.rel (%p424) target = $region48
      $region47: #{tpu_custom_call.1} parent=5 // pred_region
        %s427 = ssub.s32 %s18, 2
        // Predicated region
        $region49: #{tpu_custom_call.1} parent=47 // pred_check
          %p428 = pneg %p125
        $region50: #{tpu_custom_call.1} parent=47 // pred_check_branch
          %430 = sbr.rel (%p428) target = $region52
        $region51: #{tpu_custom_call.1} parent=47 // pred_region
          %s431 = sand.u32 %s110, 1
          %s432 = scalar_lea.sflag [#allocation4], %s431
          %s433 = sand.u32 %s110, 1
          %s434 = smul.addr %s433, 4
          %s435 = scalar_lea.vmem [#allocation7], %s434
          %436 = dma.done %s432, 64
        $region52: #{tpu_custom_call.1} parent=47 // pred_fallthru
          _
      $region48: #{tpu_custom_call.1} parent=5 // pred_fallthru
        _
    $region6: #{tpu_custom_call.1} parent=1 // loop_footer
      %s22 = sadd.s32 1, %s18
    $region7: #{tpu_custom_call.1} parent=1 // loop_footer_branch
      %17 = sbr.rel target = $region3
    $region8: #{tpu_custom_call.1} parent=1 // loop_exit
      _
    %437 = vsyncpa [#allocation3], 1
    %s438 = scalar_lea.sflag [#allocation3], 1
    %439 = vsyncpa %s438, 1
    %440 = vsyncpa [#allocation6], 1
    %s441 = scalar_lea.sflag [#allocation6], 1
    %442 = vsyncpa %s441, 1
    %443 = vsyncpa [#allocation4], 1
    %s444 = scalar_lea.sflag [#allocation4], 1
    %445 = vsyncpa %s444, 1

</llo_original>
